<compile_context>
chip_gen: v6e
topology: v6e:2x2x1
jax: 0.10.0
libtpu: 0.0.40
codegen_flags: <defaults>
</compile_context>

<pallas_src>
import functools
import math

import jax
import jax.numpy as jnp
from jax import lax  # noqa: F401  (kept for clarity / future dot_general use)
from jax.experimental import pallas as pl
from jax.experimental.pallas import tpu as pltpu


_MXU_DTYPE = jnp.bfloat16   # matmul operand dtype (accumulation stays f32)


def _pick_tile(n, preferred, align):
    """Largest multiple-of-`align` tile <= preferred that divides n, else n."""
    if n <= preferred:
        return n
    t = (preferred // align) * align
    while t >= align:
        if n % t == 0:
            return t
        t -= align
    return n


@functools.lru_cache(maxsize=None)
def _vmem_limit_bytes():
    """~75% of physical VMEM (96 MiB on v5e/v6e, 48 MiB on v7x); None -> default."""
    try:
        info = pltpu.get_tpu_info()
        return int(min(info.vmem_capacity_bytes * 3 // 4, 128 * 1024 * 1024))
    except Exception:   # fall back to the compiler's default scoped limit
        return None


def _compiler_params(dimension_semantics):
    kwargs = dict(dimension_semantics=dimension_semantics)
    limit = _vmem_limit_bytes()
    if limit is not None:
        kwargs["vmem_limit_bytes"] = limit
    return pltpu.CompilerParams(**kwargs)


# ----------------------------------------------------------------------------
# Tiled linear kernels (bf16 MXU operands, f32 accumulation)
# ----------------------------------------------------------------------------

def _linear_kernel(x_ref, w_ref, b_ref, o_ref, acc_ref):
    """out[i, j] = sum_k x[i, k] @ w[k, j] + b[j]  (grid = (rows, cols, k))."""
    k = pl.program_id(2)

    @pl.when(k == 0)
    def _():
        acc_ref[...] = jnp.zeros_like(acc_ref)

    acc_ref[...] += jnp.dot(x_ref[...].astype(_MXU_DTYPE),
                            w_ref[...].astype(_MXU_DTYPE),
                            preferred_element_type=jnp.float32)

    @pl.when(k == pl.num_programs(2) - 1)
    def _():
        o_ref[...] = (acc_ref[...] + b_ref[...]).astype(o_ref.dtype)


def linear(x, w, b, *, out_dtype=None, tm=None, tn=None, tk=None):
    """x: (N, Din), w: (Din, Dout), b: (1, Dout) -> (N, Dout)."""
    n, din = x.shape
    dout = w.shape[1]
    out_dtype = x.dtype if out_dtype is None else out_dtype
    tm = _pick_tile(n, 1024, 8) if tm is None else tm          # big tm: less W re-stream
    tn = _pick_tile(dout, 1024, 128) if tn is None else tn     # Dout blocking (v7x VMEM)
    tk = _pick_tile(din, 512, 128) if tk is None else tk
    grid = (n // tm, dout // tn, din // tk)
    cost = pl.CostEstimate(
        flops=2 * n * din * dout,
        transcendentals=0,
        bytes_accessed=(n * din * x.dtype.itemsize
                        + din * dout * w.dtype.itemsize
                        + dout * b.dtype.itemsize
                        + n * dout * jnp.dtype(out_dtype).itemsize))
    return pl.pallas_call(
        _linear_kernel,
        out_shape=jax.ShapeDtypeStruct((n, dout), out_dtype),
        grid=grid,
        in_specs=[
            pl.BlockSpec((tm, tk), lambda i, j, k: (i, k)),
            pl.BlockSpec((tk, tn), lambda i, j, k: (k, j)),
            pl.BlockSpec((1, tn), lambda i, j, k: (0, j)),
        ],
        out_specs=pl.BlockSpec((tm, tn), lambda i, j, k: (i, j)),
        scratch_shapes=[pltpu.VMEM((tm, tn), jnp.float32)],
        compiler_params=_compiler_params(("parallel", "parallel", "arbitrary")),
        cost_estimate=cost,
    )(x, w, b)


def _qkv_linear_kernel(x_ref, w_ref, b_ref, o_ref, acc_ref):
    """out[j, i] = sum_k x[i, k] @ w[j, k] + b[j]  (grid = (rows, k); x read once)."""
    k = pl.program_id(1)

    @pl.when(k == 0)
    def _():
        acc_ref[...] = jnp.zeros_like(acc_ref)

    xb = x_ref[...].astype(_MXU_DTYPE)      # one HBM read of x per (i, k) step
    for j in range(3):                      # 3 full-width MXU matmuls
        acc_ref[j] += jnp.dot(xb, w_ref[j].astype(_MXU_DTYPE),
                              preferred_element_type=jnp.float32)

    @pl.when(k == pl.num_programs(1) - 1)
    def _():
        o_ref[...] = (acc_ref[...] + b_ref[...]).astype(o_ref.dtype)


def qkv_linear(x, w3, b3, *, out_dtype=None, tm=None, tk=None):
    """x: (N, Din), w3: (3, Din, C), b3: (3, 1, C) -> (3, N, C)."""
    n, din = x.shape
    c = w3.shape[-1]
    out_dtype = x.dtype if out_dtype is None else out_dtype
    tm = _pick_tile(n, 1024, 8) if tm is None else tm
    tk = _pick_tile(din, 512, 128) if tk is None else tk
    grid = (n // tm, din // tk)
    cost = pl.CostEstimate(
        flops=2 * n * din * 3 * c,
        transcendentals=0,
        bytes_accessed=(n * din * x.dtype.itemsize
                        + 3 * din * c * w3.dtype.itemsize
                        + 3 * c * b3.dtype.itemsize
                        + 3 * n * c * jnp.dtype(out_dtype).itemsize))
    return pl.pallas_call(
        _qkv_linear_kernel,
        out_shape=jax.ShapeDtypeStruct((3, n, c), out_dtype),
        grid=grid,
        in_specs=[
            pl.BlockSpec((tm, tk), lambda i, k: (i, k)),
            pl.BlockSpec((3, tk, c), lambda i, k: (0, k, 0)),
            pl.BlockSpec((3, 1, c), lambda i, k: (0, 0, 0)),
        ],
        out_specs=pl.BlockSpec((3, tm, c), lambda i, k: (0, i, 0)),
        scratch_shapes=[pltpu.VMEM((3, tm, c), jnp.float32)],
        compiler_params=_compiler_params(("parallel", "arbitrary")),
        cost_estimate=cost,
    )(x, w3, b3)


# ----------------------------------------------------------------------------
# Flash attention kernel (online softmax, all heads batched per grid step)
# ----------------------------------------------------------------------------

def _flash_attn_kernel(q_ref, k_ref, v_ref, o_ref, m_ref, l_ref, acc_ref,
                       *, num_heads, head_dim):
    kv = pl.program_id(2)

    @pl.when(kv == 0)
    def _():
        m_ref[...] = jnp.full_like(m_ref, -jnp.inf)
        l_ref[...] = jnp.zeros_like(l_ref)
        acc_ref[...] = jnp.zeros_like(acc_ref)

    q_all = q_ref[0, 0]      # (tq, C) bf16
    k_all = k_ref[0, 0]      # (tk, C) bf16
    v_all = v_ref[0, 0]      # (tk, C) bf16

    def split_heads(x):      # (n, C) -> (H, n, hd); heads on the leading axis
        return jnp.stack(
            [x[:, h * head_dim:(h + 1) * head_dim] for h in range(num_heads)],
            axis=0)

    q = split_heads(q_all)   # (H, tq, hd)
    k = split_heads(k_all)   # (H, tk, hd)
    v = split_heads(v_all)   # (H, tk, hd)

    # One batched MXU call for all heads; K is contracted on its last dim so
    # no XLU transpose of K is needed.  1/sqrt(head_dim) is already folded
    # into the q projection weights, so there is no in-kernel scaling.
    s = jnp.einsum('hqd,hkd->hqk', q, k,
                   preferred_element_type=jnp.float32)            # (H, tq, tk)

    m_prev = m_ref[...]                                            # (H, tq, 1)
    m_new = jnp.maximum(m_prev, jnp.max(s, axis=-1, keepdims=True))
    alpha = jnp.exp(m_prev - m_new)                                # (H, tq, 1)
    p = jnp.exp(s - m_new)             # one big fused EUP op over (H, tq, tk)

    l_ref[...] = alpha * l_ref[...] + jnp.sum(p, axis=-1, keepdims=True)
    pv = jnp.einsum('hqk,hkd->hqd', p.astype(v.dtype), v,
                    preferred_element_type=jnp.float32)            # (H, tq, hd)
    acc_ref[...] = alpha * acc_ref[...] + pv
    m_ref[...] = m_new

    @pl.when(kv == pl.num_programs(2) - 1)
    def _():
        inv_l = pl.reciprocal(l_ref[...], approx=True)             # EUP slot
        out = acc_ref[...] * inv_l                                 # (H, tq, hd)
        # Lane-dense (tq, C) store in the (B, seq, C) layout proj expects.
        # (Once-per-q-tile epilogue; H-way lane concat is the proven path.)
        o_ref[0] = jnp.concatenate(
            [out[h] for h in range(num_heads)], axis=-1).astype(o_ref.dtype)


def attention(qkv, num_heads, head_dim, *, out_dtype=None, tq=None, tk=None):
    """qkv: (3, B, seq, C) -> (B, seq, C) attention output (heads packed)."""
    _, b, seq, c = qkv.shape
    out_dtype = qkv.dtype if out_dtype is None else out_dtype
    # tq kept small-ish so b * (seq // tq) >= 2 parallel iterations feed both
    # v7x TensorCores; tk larger to amortize per-step overhead / K,V DMA.
    tq = _pick_tile(seq, 128, 8) if tq is None else tq
    tk = _pick_tile(seq, 512, 8) if tk is None else tk
    grid = (b, seq // tq, seq // tk)

    q_spec = pl.BlockSpec((1, 1, tq, c), lambda bi, qi, ki: (0, bi, qi, 0))
    k_spec = pl.BlockSpec((1, 1, tk, c), lambda bi, qi, ki: (1, bi, ki, 0))
    v_spec = pl.BlockSpec((1, 1, tk, c), lambda bi, qi, ki: (2, bi, ki, 0))
    o_spec = pl.BlockSpec((1, tq, c), lambda bi, qi, ki: (bi, qi, 0))

    cost = pl.CostEstimate(
        flops=4 * b * num_heads * seq * seq * head_dim,
        transcendentals=b * num_heads * seq * seq,
        bytes_accessed=(3 * b * seq * c * qkv.dtype.itemsize
                        + b * seq * c * jnp.dtype(out_dtype).itemsize))

    kernel = functools.partial(_flash_attn_kernel,
                               num_heads=num_heads, head_dim=head_dim)
    return pl.pallas_call(
        kernel,
        out_shape=jax.ShapeDtypeStruct((b, seq, c), out_dtype),
        grid=grid,
        in_specs=[q_spec, k_spec, v_spec],
        out_specs=o_spec,
        scratch_shapes=[
            pltpu.VMEM((num_heads, tq, 1), jnp.float32),          # m (running max)
            pltpu.VMEM((num_heads, tq, 1), jnp.float32),          # l (running denom)
            pltpu.VMEM((num_heads, tq, head_dim), jnp.float32),   # acc
        ],
        compiler_params=_compiler_params(("parallel", "parallel", "arbitrary")),
        cost_estimate=cost,
    )(qkv, qkv, qkv)


# ----------------------------------------------------------------------------
# FlashAttention module (forward pass)
# ----------------------------------------------------------------------------

class FlashAttentionParams:
    def __init__(self, dim, num_heads=8, qkv_bias=True, key=None):
        assert dim % num_heads == 0
        self.dim = dim
        self.num_heads = num_heads
        self.head_dim = dim // num_heads
        if key is None:
            key = jax.random.PRNGKey(0)
        k1, k2, k3, k4 = jax.random.split(key, 4)
        bound = 1.0 / math.sqrt(dim)
        # Stored transposed relative to nn.Linear so forward is x @ W + b.
        self.qkv_w = jax.random.uniform(k1, (dim, 3 * dim), jnp.float32,
                                        -bound, bound)
        self.qkv_b = (jax.random.uniform(k2, (3 * dim,), jnp.float32,
                                         -bound, bound)
                      if qkv_bias else jnp.zeros((3 * dim,), jnp.float32))
        self.proj_w = jax.random.uniform(k3, (dim, dim), jnp.float32,
                                         -bound, bound)
        self.proj_b = jax.random.uniform(k4, (dim,), jnp.float32,
                                         -bound, bound)


def flash_attention_forward(params, x):
    """x: (B, X, Y, Z, C) float32 -> (B, X, Y, Z, C)."""
    B, X, Y, Z, C = x.shape
    H, hd = params.num_heads, params.head_dim
    seq = X * Y * Z

    x_flat = x.reshape(B * seq, C)

    # Trace-time weight reorg: (C, 3C) -> (3, C, C) so the projection emits
    # q/k/v split along a leading axis (no activation transpose / HBM round
    # trip between the Pallas calls), and fold 1/sqrt(head_dim) into the q
    # weights/bias so the attention kernel never scales q.
    scale = 1.0 / math.sqrt(hd)
    w3 = params.qkv_w.reshape(C, 3, C).transpose(1, 0, 2)        # (3, C, C)
    w3 = w3.at[0].multiply(scale)
    b3 = params.qkv_b.reshape(3, 1, C)                           # (3, 1, C)
    b3 = b3.at[0].multiply(scale)

    # bf16 intermediates halve HBM traffic of the (3, B*seq, C) tensor and of
    # the K/V streams; all accumulation stays f32 inside the kernels.
    qkv = qkv_linear(x_flat, w3, b3, out_dtype=jnp.bfloat16)     # (3, B*seq, C)
    qkv = qkv.reshape(3, B, seq, C)                              # free view

    out = attention(qkv, H, hd, out_dtype=jnp.bfloat16)          # (B, seq, C)

    out = linear(out.reshape(B * seq, C), params.proj_w,
                 params.proj_b.reshape(1, C), out_dtype=x.dtype) # (B*seq, C)
    return out.reshape(B, X, Y, Z, C)


# ----------------------------------------------------------------------------
# Reference (pure JAX, f32) for correctness check
# ----------------------------------------------------------------------------

def reference_forward(params, x):
    B, X, Y, Z, C = x.shape
    H, hd = params.num_heads, params.head_dim
    seq = X * Y * Z
    qkv = x.reshape(B * seq, C) @ params.qkv_w + params.qkv_b
    qkv = qkv.reshape(B, seq, 3, H, hd).transpose(2, 0, 3, 1, 4)
    q, k, v = qkv[0], qkv[1], qkv[2]
    s = jnp.einsum('bhqd,bhkd->bhqk', q, k) / math.sqrt(hd)
    p = jax.nn.softmax(s, axis=-1)
    o = jnp.einsum('bhqk,bhkd->bhqd', p, v)
    o = o.transpose(0, 2, 1, 3).reshape(B * seq, C)
    o = o @ params.proj_w + params.proj_b
    return o.reshape(B, X, Y, Z, C)


if __name__ == "__main__":
    key = jax.random.PRNGKey(0)
    kx, kp = jax.random.split(key)

    # Small shapes: B=2, X=Y=Z=4 (seq=64), dim=32, heads=4 (head_dim=8)
    B, X, Y, Z, C = 2, 4, 4, 4, 32
    num_heads = 4

    x = jax.random.normal(kx, (B, X, Y, Z, C), dtype=jnp.float32)
    params = FlashAttentionParams(C, num_heads=num_heads, qkv_bias=True, key=kp)

    out = flash_attention_forward(params, x)
    out = jax.block_until_ready(out)

    ref = reference_forward(params, x)
    assert out.shape == (B, X, Y, Z, C)
    max_err = float(jnp.max(jnp.abs(out - ref)))
    # Tolerance sized for bf16 MXU operands with f32 accumulation (+ approx
    # reciprocal in the softmax normalization) vs the pure-f32 reference.
    assert jnp.allclose(out, ref, atol=5e-2, rtol=5e-2), max_err

    print("KERNEL_OK")
</pallas_src>

<mosaic_0001>
module attributes {stable_mosaic.version = 11 : i64} {
  func.func @_qkv_linear_kernel(%arg0: i32, %arg1: i32, %arg2: memref<128x32xf32, #tpu.memory_space<vmem>>, %arg3: memref<3x32x32xf32, #tpu.memory_space<vmem>>, %arg4: memref<3x1x32xf32, #tpu.memory_space<vmem>>, %arg5: memref<3x128x32xbf16, #tpu.memory_space<vmem>>, %arg6: memref<3x128x32xf32, #tpu.memory_space<vmem>>) attributes {dimension_semantics = [#tpu.dimension_semantics<parallel>, #tpu.dimension_semantics<arbitrary>], iteration_bounds = array<i64: 1, 1>, scalar_prefetch = 0 : i64, scratch_operands = 1 : i64, tpu.core_type = #tpu.core_type<tc>, window_params = [{transform_indices = @transform_0, window_bounds = array<i64: 128, 32>}, {transform_indices = @transform_1, window_bounds = array<i64: 3, 32, 32>}, {pipeline_mode = #tpu.pipeline_mode<synchronous>, transform_indices = @transform_2, window_bounds = array<i64: 3, 1, 32>}, {transform_indices = @transform_3, window_bounds = array<i64: 3, 128, 32>}]} {
    %c0_i32 = arith.constant 0 : i32
    %0 = arith.cmpi eq, %arg1, %c0_i32 : i32
    %1 = arith.extui %0 : i1 to i32
    %c0_i32_0 = arith.constant 0 : i32
    %2 = arith.cmpi ne, %1, %c0_i32_0 : i32
    scf.if %2 {
      %cst_31 = arith.constant 0.000000e+00 : f32
      %38 = vector.broadcast %cst_31 : f32 to vector<3x128x32xf32>
      %c0_32 = arith.constant 0 : index
      %c0_33 = arith.constant 0 : index
      %c0_34 = arith.constant 0 : index
      %39 = vector.load %arg6[%c0_32, %c0_33, %c0_34] : memref<3x128x32xf32, #tpu.memory_space<vmem>>, vector<3x128x32xf32>
      tpu.vector_store %arg6[%c0_32, %c0_33, %c0_34], %38 {strides = array<i32>} : memref<3x128x32xf32, #tpu.memory_space<vmem>>, vector<3x128x32xf32>,
    } else {
    }
    %c0 = arith.constant 0 : index
    %c0_1 = arith.constant 0 : index
    %3 = vector.load %arg2[%c0, %c0_1] : memref<128x32xf32, #tpu.memory_space<vmem>>, vector<128x32xf32>
    %4 = arith.truncf %3 : vector<128x32xf32> to vector<128x32xbf16>
    %c0_2 = arith.constant 0 : index
    %c0_3 = arith.constant 0 : index
    %c0_4 = arith.constant 0 : index
    %5 = vector.load %arg6[%c0_2, %c0_3, %c0_4] : memref<3x128x32xf32, #tpu.memory_space<vmem>>, vector<1x128x32xf32>
    %6 = vector.shape_cast %5 : vector<1x128x32xf32> to vector<128x32xf32>
    %c0_5 = arith.constant 0 : index
    %c0_6 = arith.constant 0 : index
    %c0_7 = arith.constant 0 : index
    %7 = vector.load %arg3[%c0_5, %c0_6, %c0_7] : memref<3x32x32xf32, #tpu.memory_space<vmem>>, vector<1x32x32xf32>
    %8 = vector.shape_cast %7 : vector<1x32x32xf32> to vector<32x32xf32>
    %9 = arith.truncf %8 : vector<32x32xf32> to vector<32x32xbf16>
    %cst = arith.constant dense<0.000000e+00> : vector<128x32xf32>
    %10 = tpu.matmul %4, %9, %cst {dimension_numbers = #tpu.dot_dimension_numbers<[1], [0], [0], [1], [0, 0, 1, 1], [], []>} : vector<128x32xbf16>, vector<32x32xbf16>, vector<128x32xf32> -> vector<128x32xf32>
    %11 = arith.addf %6, %10 : vector<128x32xf32>
    %c0_8 = arith.constant 0 : index
    %c0_9 = arith.constant 0 : index
    %c0_10 = arith.constant 0 : index
    %12 = vector.load %arg6[%c0_8, %c0_9, %c0_10] : memref<3x128x32xf32, #tpu.memory_space<vmem>>, vector<1x128x32xf32>
    %13 = vector.shape_cast %12 : vector<1x128x32xf32> to vector<128x32xf32>
    %14 = vector.shape_cast %11 : vector<128x32xf32> to vector<1x128x32xf32>
    tpu.vector_store %arg6[%c0_8, %c0_9, %c0_10], %14 {strides = array<i32>} : memref<3x128x32xf32, #tpu.memory_space<vmem>>, vector<1x128x32xf32>,
    %c1 = arith.constant 1 : index
    %c0_11 = arith.constant 0 : index
    %c0_12 = arith.constant 0 : index
    %15 = vector.load %arg6[%c1, %c0_11, %c0_12] : memref<3x128x32xf32, #tpu.memory_space<vmem>>, vector<1x128x32xf32>
    %16 = vector.shape_cast %15 : vector<1x128x32xf32> to vector<128x32xf32>
    %c1_13 = arith.constant 1 : index
    %c0_14 = arith.constant 0 : index
    %c0_15 = arith.constant 0 : index
    %17 = vector.load %arg3[%c1_13, %c0_14, %c0_15] : memref<3x32x32xf32, #tpu.memory_space<vmem>>, vector<1x32x32xf32>
    %18 = vector.shape_cast %17 : vector<1x32x32xf32> to vector<32x32xf32>
    %19 = arith.truncf %18 : vector<32x32xf32> to vector<32x32xbf16>
    %cst_16 = arith.constant dense<0.000000e+00> : vector<128x32xf32>
    %20 = tpu.matmul %4, %19, %cst_16 {dimension_numbers = #tpu.dot_dimension_numbers<[1], [0], [0], [1], [0, 0, 1, 1], [], []>} : vector<128x32xbf16>, vector<32x32xbf16>, vector<128x32xf32> -> vector<128x32xf32>
    %21 = arith.addf %16, %20 : vector<128x32xf32>
    %c1_17 = arith.constant 1 : index
    %c0_18 = arith.constant 0 : index
    %c0_19 = arith.constant 0 : index
    %22 = vector.load %arg6[%c1_17, %c0_18, %c0_19] : memref<3x128x32xf32, #tpu.memory_space<vmem>>, vector<1x128x32xf32>
    %23 = vector.shape_cast %22 : vector<1x128x32xf32> to vector<128x32xf32>
    %24 = vector.shape_cast %21 : vector<128x32xf32> to vector<1x128x32xf32>
    tpu.vector_store %arg6[%c1_17, %c0_18, %c0_19], %24 {strides = array<i32>} : memref<3x128x32xf32, #tpu.memory_space<vmem>>, vector<1x128x32xf32>,
    %c2 = arith.constant 2 : index
    %c0_20 = arith.constant 0 : index
    %c0_21 = arith.constant 0 : index
    %25 = vector.load %arg6[%c2, %c0_20, %c0_21] : memref<3x128x32xf32, #tpu.memory_space<vmem>>, vector<1x128x32xf32>
    %26 = vector.shape_cast %25 : vector<1x128x32xf32> to vector<128x32xf32>
    %c2_22 = arith.constant 2 : index
    %c0_23 = arith.constant 0 : index
    %c0_24 = arith.constant 0 : index
    %27 = vector.load %arg3[%c2_22, %c0_23, %c0_24] : memref<3x32x32xf32, #tpu.memory_space<vmem>>, vector<1x32x32xf32>
    %28 = vector.shape_cast %27 : vector<1x32x32xf32> to vector<32x32xf32>
    %29 = arith.truncf %28 : vector<32x32xf32> to vector<32x32xbf16>
    %cst_25 = arith.constant dense<0.000000e+00> : vector<128x32xf32>
    %30 = tpu.matmul %4, %29, %cst_25 {dimension_numbers = #tpu.dot_dimension_numbers<[1], [0], [0], [1], [0, 0, 1, 1], [], []>} : vector<128x32xbf16>, vector<32x32xbf16>, vector<128x32xf32> -> vector<128x32xf32>
    %31 = arith.addf %26, %30 : vector<128x32xf32>
    %c2_26 = arith.constant 2 : index
    %c0_27 = arith.constant 0 : index
    %c0_28 = arith.constant 0 : index
    %32 = vector.load %arg6[%c2_26, %c0_27, %c0_28] : memref<3x128x32xf32, #tpu.memory_space<vmem>>, vector<1x128x32xf32>
    %33 = vector.shape_cast %32 : vector<1x128x32xf32> to vector<128x32xf32>
    %34 = vector.shape_cast %31 : vector<128x32xf32> to vector<1x128x32xf32>
    tpu.vector_store %arg6[%c2_26, %c0_27, %c0_28], %34 {strides = array<i32>} : memref<3x128x32xf32, #tpu.memory_space<vmem>>, vector<1x128x32xf32>,
    %c0_i32_29 = arith.constant 0 : i32
    %35 = arith.cmpi eq, %arg1, %c0_i32_29 : i32
    %36 = arith.extui %35 : i1 to i32
    %c0_i32_30 = arith.constant 0 : i32
    %37 = arith.cmpi ne, %36, %c0_i32_30 : i32
    scf.if %37 {
      %c0_31 = arith.constant 0 : index
      %c0_32 = arith.constant 0 : index
      %c0_33 = arith.constant 0 : index
      %38 = vector.load %arg6[%c0_31, %c0_32, %c0_33] : memref<3x128x32xf32, #tpu.memory_space<vmem>>, vector<3x128x32xf32>
      %c0_34 = arith.constant 0 : index
      %c0_35 = arith.constant 0 : index
      %c0_36 = arith.constant 0 : index
      %39 = vector.load %arg4[%c0_34, %c0_35, %c0_36] : memref<3x1x32xf32, #tpu.memory_space<vmem>>, vector<3x1x32xf32>
      %40 = vector.broadcast %39 : vector<3x1x32xf32> to vector<3x128x32xf32>
      %41 = arith.addf %38, %40 : vector<3x128x32xf32>
      %42 = arith.truncf %41 : vector<3x128x32xf32> to vector<3x128x32xbf16>
      %c0_37 = arith.constant 0 : index
      %c0_38 = arith.constant 0 : index
      %c0_39 = arith.constant 0 : index
      %43 = vector.load %arg5[%c0_37, %c0_38, %c0_39] : memref<3x128x32xbf16, #tpu.memory_space<vmem>>, vector<3x128x32xbf16>
      tpu.vector_store %arg5[%c0_37, %c0_38, %c0_39], %42 {strides = array<i32>} : memref<3x128x32xbf16, #tpu.memory_space<vmem>>, vector<3x128x32xbf16>,
    } else {
    }
    return
  }
  func.func @transform_0(%arg0: i32, %arg1: i32) -> (i32, i32) {
    %c0_i32 = arith.constant 0 : i32
    return %arg0, %arg1 : i32, i32
  }
  func.func @transform_1(%arg0: i32, %arg1: i32) -> (i32, i32, i32) {
    %c0_i32 = arith.constant 0 : i32
    %c0_i32_0 = arith.constant 0 : i32
    %c0_i32_1 = arith.constant 0 : i32
    return %c0_i32, %arg1, %c0_i32_0 : i32, i32, i32
  }
  func.func @transform_2(%arg0: i32, %arg1: i32) -> (i32, i32, i32) {
    %c0_i32 = arith.constant 0 : i32
    %c0_i32_0 = arith.constant 0 : i32
    %c0_i32_1 = arith.constant 0 : i32
    %c0_i32_2 = arith.constant 0 : i32
    return %c0_i32, %c0_i32_0, %c0_i32_1 : i32, i32, i32
  }
  func.func @transform_3(%arg0: i32, %arg1: i32) -> (i32, i32, i32) {
    %c0_i32 = arith.constant 0 : i32
    %c0_i32_0 = arith.constant 0 : i32
    %c0_i32_1 = arith.constant 0 : i32
    return %c0_i32, %arg0, %c0_i32_0 : i32, i32, i32
  }
}

</mosaic_0001>

<llo_original>
// kernel: tpu_custom_call.1
$region0: #{tpu_custom_call.1}
  #allocation0 [shape = 'u32[]', space=smem, size = 0x4, offset = 0x4, fixed_abs, tag = 'smem constant byte address 0x4 - core index']
  #allocation1 [shape = 'u32[144,128]{1,0:T(1,128)}', space=vmem, size = 0x12000, scoped, tag = 'internal scratch']
  #allocation2 [shape = 'f32[3,128,32]{2,1,0:T(8,128)}', space=vmem, size = 0x30000, scoped, tag = 'scratch operand']
  %s0 = inlined_call_operand.vmem [shape: f32[128,32], index: 0, kind: input, shape index: {}]
  %s1 = inlined_call_operand.vmem [shape: f32[3,32,32], index: 1, kind: input, shape index: {}]
  %s2 = inlined_call_operand.vmem [shape: f32[3,1,32], index: 2, kind: input, shape index: {}]
  %s3 = inlined_call_operand.vmem [shape: bf16[3,128,32], index: 3, kind: output, shape index: {}]
  %s4 = sld [smem:[#allocation0]]
  $region30: #{tpu_custom_call.1} parent=0
    _
  %s6 = ssub.s32 1, %s4
  %s7 = scalar_select 0, %s6, %s4
  // Predicated region
  $region2: #{tpu_custom_call.1} parent=0 // pred_check
    _
  $region3: #{tpu_custom_call.1} parent=0 // pred_check_branch
    %9 = sbr.rel (0) target = $region5
  $region4: #{tpu_custom_call.1} parent=0 // pred_region
    _
  $region5: #{tpu_custom_call.1} parent=0 // pred_fallthru
    _
  // Predicated region
  $region6: #{tpu_custom_call.1} parent=0 // pred_check
    _
  $region7: #{tpu_custom_call.1} parent=0 // pred_check_branch
    %11 = sbr.rel (0) target = $region9
  $region8: #{tpu_custom_call.1} parent=0 // pred_region
    _
  $region9: #{tpu_custom_call.1} parent=0 // pred_fallthru
    _
  // Predicated region
  $region10: #{tpu_custom_call.1} parent=0 // pred_check
    _
  $region11: #{tpu_custom_call.1} parent=0 // pred_check_branch
    %13 = sbr.rel (0) target = $region13
  $region12: #{tpu_custom_call.1} parent=0 // pred_region
    _
  $region13: #{tpu_custom_call.1} parent=0 // pred_fallthru
    _
  %p15 = scmp.eq.s32.totalorder 0, 0
  // Predicated region
  $region14: #{tpu_custom_call.1} parent=0 // pred_check
    %p16 = pneg %p15
  $region15: #{tpu_custom_call.1} parent=0 // pred_check_branch
    %18 = sbr.rel (%p16) target = $region17
  $region16: #{tpu_custom_call.1} parent=0 // pred_region
    %vm19 = vcmask 261120
    %20 = vst.msk [vmem:[#allocation2] sm:$0xff] %vm19, 0.0
    %21 = vst.msk [vmem:[#allocation2 + $0x8] sm:$0xff] %vm19, 0.0
    %22 = vst.msk [vmem:[#allocation2 + $0x10] sm:$0xff] %vm19, 0.0
    %23 = vst.msk [vmem:[#allocation2 + $0x18] sm:$0xff] %vm19, 0.0
    %24 = vst.msk [vmem:[#allocation2 + $0x20] sm:$0xff] %vm19, 0.0
    %25 = vst.msk [vmem:[#allocation2 + $0x28] sm:$0xff] %vm19, 0.0
    %26 = vst.msk [vmem:[#allocation2 + $0x30] sm:$0xff] %vm19, 0.0
    %27 = vst.msk [vmem:[#allocation2 + $0x38] sm:$0xff] %vm19, 0.0
    %28 = vst.msk [vmem:[#allocation2 + $0x40] sm:$0xff] %vm19, 0.0
    %29 = vst.msk [vmem:[#allocation2 + $0x48] sm:$0xff] %vm19, 0.0
    %30 = vst.msk [vmem:[#allocation2 + $0x50] sm:$0xff] %vm19, 0.0
    %31 = vst.msk [vmem:[#allocation2 + $0x58] sm:$0xff] %vm19, 0.0
    %32 = vst.msk [vmem:[#allocation2 + $0x60] sm:$0xff] %vm19, 0.0
    %33 = vst.msk [vmem:[#allocation2 + $0x68] sm:$0xff] %vm19, 0.0
    %34 = vst.msk [vmem:[#allocation2 + $0x70] sm:$0xff] %vm19, 0.0
    %35 = vst.msk [vmem:[#allocation2 + $0x78] sm:$0xff] %vm19, 0.0
    %36 = vst.msk [vmem:[#allocation2 + $0x80] sm:$0xff] %vm19, 0.0
    %37 = vst.msk [vmem:[#allocation2 + $0x88] sm:$0xff] %vm19, 0.0
    %38 = vst.msk [vmem:[#allocation2 + $0x90] sm:$0xff] %vm19, 0.0
    %39 = vst.msk [vmem:[#allocation2 + $0x98] sm:$0xff] %vm19, 0.0
    %40 = vst.msk [vmem:[#allocation2 + $0xa0] sm:$0xff] %vm19, 0.0
    %41 = vst.msk [vmem:[#allocation2 + $0xa8] sm:$0xff] %vm19, 0.0
    %42 = vst.msk [vmem:[#allocation2 + $0xb0] sm:$0xff] %vm19, 0.0
    %43 = vst.msk [vmem:[#allocation2 + $0xb8] sm:$0xff] %vm19, 0.0
    %44 = vst.msk [vmem:[#allocation2 + $0xc0] sm:$0xff] %vm19, 0.0
    %45 = vst.msk [vmem:[#allocation2 + $0xc8] sm:$0xff] %vm19, 0.0
    %46 = vst.msk [vmem:[#allocation2 + $0xd0] sm:$0xff] %vm19, 0.0
    %47 = vst.msk [vmem:[#allocation2 + $0xd8] sm:$0xff] %vm19, 0.0
    %48 = vst.msk [vmem:[#allocation2 + $0xe0] sm:$0xff] %vm19, 0.0
    %49 = vst.msk [vmem:[#allocation2 + $0xe8] sm:$0xff] %vm19, 0.0
    %50 = vst.msk [vmem:[#allocation2 + $0xf0] sm:$0xff] %vm19, 0.0
    %51 = vst.msk [vmem:[#allocation2 + $0xf8] sm:$0xff] %vm19, 0.0
    %52 = vst.msk [vmem:[#allocation2 + $0x100] sm:$0xff] %vm19, 0.0
    %53 = vst.msk [vmem:[#allocation2 + $0x108] sm:$0xff] %vm19, 0.0
    %54 = vst.msk [vmem:[#allocation2 + $0x110] sm:$0xff] %vm19, 0.0
    %55 = vst.msk [vmem:[#allocation2 + $0x118] sm:$0xff] %vm19, 0.0
    %56 = vst.msk [vmem:[#allocation2 + $0x120] sm:$0xff] %vm19, 0.0
    %57 = vst.msk [vmem:[#allocation2 + $0x128] sm:$0xff] %vm19, 0.0
    %58 = vst.msk [vmem:[#allocation2 + $0x130] sm:$0xff] %vm19, 0.0
    %59 = vst.msk [vmem:[#allocation2 + $0x138] sm:$0xff] %vm19, 0.0
    %60 = vst.msk [vmem:[#allocation2 + $0x140] sm:$0xff] %vm19, 0.0
    %61 = vst.msk [vmem:[#allocation2 + $0x148] sm:$0xff] %vm19, 0.0
    %62 = vst.msk [vmem:[#allocation2 + $0x150] sm:$0xff] %vm19, 0.0
    %63 = vst.msk [vmem:[#allocation2 + $0x158] sm:$0xff] %vm19, 0.0
    %64 = vst.msk [vmem:[#allocation2 + $0x160] sm:$0xff] %vm19, 0.0
    %65 = vst.msk [vmem:[#allocation2 + $0x168] sm:$0xff] %vm19, 0.0
    %66 = vst.msk [vmem:[#allocation2 + $0x170] sm:$0xff] %vm19, 0.0
    %67 = vst.msk [vmem:[#allocation2 + $0x178] sm:$0xff] %vm19, 0.0
  $region17: #{tpu_custom_call.1} parent=0 // pred_fallthru
    _
  %v68 = vld [vmem:[%s0] sm:$0xff]
  %v69 = vld [vmem:[%s0 + $0x8] sm:$0xff]
  %v70 = vld [vmem:[%s0 + $0x10] sm:$0xff]
  %v71 = vld [vmem:[%s0 + $0x18] sm:$0xff]
  %v72 = vld [vmem:[%s0 + $0x20] sm:$0xff]
  %v73 = vld [vmem:[%s0 + $0x28] sm:$0xff]
  %v74 = vld [vmem:[%s0 + $0x30] sm:$0xff]
  %v75 = vld [vmem:[%s0 + $0x38] sm:$0xff]
  %v76 = vld [vmem:[%s0 + $0x40] sm:$0xff]
  %v77 = vld [vmem:[%s0 + $0x48] sm:$0xff]
  %v78 = vld [vmem:[%s0 + $0x50] sm:$0xff]
  %v79 = vld [vmem:[%s0 + $0x58] sm:$0xff]
  %v80 = vld [vmem:[%s0 + $0x60] sm:$0xff]
  %v81 = vld [vmem:[%s0 + $0x68] sm:$0xff]
  %v82 = vld [vmem:[%s0 + $0x70] sm:$0xff]
  %v83 = vld [vmem:[%s0 + $0x78] sm:$0xff]
  %v84 = vpack.c.bf16 %v69, %v68
  %v85 = vpack.c.bf16 %v71, %v70
  %v86 = vpack.c.bf16 %v73, %v72
  %v87 = vpack.c.bf16 %v75, %v74
  %v88 = vpack.c.bf16 %v77, %v76
  %v89 = vpack.c.bf16 %v79, %v78
  %v90 = vpack.c.bf16 %v81, %v80
  %v91 = vpack.c.bf16 %v83, %v82
  %v92 = vld [vmem:[#allocation2] sm:$0xff]
  %v93 = vld [vmem:[#allocation2 + $0x8] sm:$0xff]
  %v94 = vld [vmem:[#allocation2 + $0x10] sm:$0xff]
  %v95 = vld [vmem:[#allocation2 + $0x18] sm:$0xff]
  %v96 = vld [vmem:[#allocation2 + $0x20] sm:$0xff]
  %v97 = vld [vmem:[#allocation2 + $0x28] sm:$0xff]
  %v98 = vld [vmem:[#allocation2 + $0x30] sm:$0xff]
  %v99 = vld [vmem:[#allocation2 + $0x38] sm:$0xff]
  %v100 = vld [vmem:[#allocation2 + $0x40] sm:$0xff]
  %v101 = vld [vmem:[#allocation2 + $0x48] sm:$0xff]
  %v102 = vld [vmem:[#allocation2 + $0x50] sm:$0xff]
  %v103 = vld [vmem:[#allocation2 + $0x58] sm:$0xff]
  %v104 = vld [vmem:[#allocation2 + $0x60] sm:$0xff]
  %v105 = vld [vmem:[#allocation2 + $0x68] sm:$0xff]
  %v106 = vld [vmem:[#allocation2 + $0x70] sm:$0xff]
  %v107 = vld [vmem:[#allocation2 + $0x78] sm:$0xff]
  %v108 = vld [vmem:[%s1] sm:$0xff]
  %v109 = vld [vmem:[%s1 + $0x8] sm:$0xff]
  %v110 = vld [vmem:[%s1 + $0x10] sm:$0xff]
  %v111 = vld [vmem:[%s1 + $0x18] sm:$0xff]
  %v112 = vpack.c.bf16 %v109, %v108
  %v113 = vpack.c.bf16 %v111, %v110
  %vm114 = vcmask 261120
  %v116 = vsel %vm114, %v84, 0
  %v119 = vsel %vm114, %v85, 0
  %v122 = vsel %vm114, %v86, 0
  %v125 = vsel %vm114, %v87, 0
  %v128 = vsel %vm114, %v88, 0
  %v131 = vsel %vm114, %v89, 0
  %v134 = vsel %vm114, %v90, 0
  %v137 = vsel %vm114, %v91, 0
  %139 = vmatprep.subr.bf16.mxu0 0
  %140 = vmatpush1.bf16.msra.mxu0 0
  %141 = vmatprep.subr.bf16.mxu0 0
  %142 = vmatpush1.bf16.msra.mxu0 0
  %143 = vmatprep.subr.bf16.mxu0 0
  %144 = vmatpush1.bf16.msra.mxu0 0
  %145 = vmatprep.subr.bf16.mxu0 0
  %146 = vmatpush1.bf16.msra.mxu0 0
  %147 = vmatprep.subr.bf16.mxu0 0
  %148 = vmatpush1.bf16.msra.mxu0 0
  %149 = vmatprep.subr.bf16.mxu0 0
  %150 = vmatpush1.bf16.msra.mxu0 0
  %151 = vmatprep.subr.bf16.mxu0 0
  %152 = vmatpush1.bf16.msra.mxu0 %v113
  %153 = vmatprep.subr.bf16.mxu0 0
  %154 = vmatpush1.bf16.msra.mxu0 %v112
  %155 = vmatprep.subr.bf16.mxu0 0
  %156 = vmatpush2.bf16.msra.mxu0 0
  %157 = vmatprep.subr.bf16.mxu0 0
  %158 = vmatpush2.bf16.msra.mxu0 0
  %159 = vmatprep.subr.bf16.mxu0 0
  %160 = vmatpush2.bf16.msra.mxu0 0
  %161 = vmatprep.subr.bf16.mxu0 0
  %162 = vmatpush2.bf16.msra.mxu0 0
  %163 = vmatprep.subr.bf16.mxu0 0
  %164 = vmatpush2.bf16.msra.mxu0 0
  %165 = vmatprep.subr.bf16.mxu0 0
  %166 = vmatpush2.bf16.msra.mxu0 0
  %167 = vmatprep.subr.bf16.mxu0 0
  %168 = vmatpush2.bf16.msra.mxu0 0
  %169 = vmatprep.subr.bf16.mxu0 0
  %170 = vmatpush2.bf16.msra.mxu0 0
  %171 = vmatprep.mubr.bf16.mxu0 0
  %172 = vmatmul.mubr.bf16.gmra.mxu0 %v116
  %v173 = vpop.f32.mrf.mxu0
  %v174 = vadd.f32 0.0, %v173
  %v175 = vpop.f32.mrf.mxu0
  %v176 = vpop.f32.mrf.mxu0
  %v177 = vadd.f32 0.0, %v176
  %v178 = vpop.f32.mrf.mxu0
  %179 = vmatprep.mubr.bf16.mxu0 0
  %180 = vmatmul.mubr.bf16.gmra.mxu0 %v119
  %v181 = vpop.f32.mrf.mxu0
  %v182 = vadd.f32 0.0, %v181
  %v183 = vpop.f32.mrf.mxu0
  %v184 = vpop.f32.mrf.mxu0
  %v185 = vadd.f32 0.0, %v184
  %v186 = vpop.f32.mrf.mxu0
  %187 = vmatprep.mubr.bf16.mxu0 0
  %188 = vmatmul.mubr.bf16.gmra.mxu0 %v122
  %v189 = vpop.f32.mrf.mxu0
  %v190 = vadd.f32 0.0, %v189
  %v191 = vpop.f32.mrf.mxu0
  %v192 = vpop.f32.mrf.mxu0
  %v193 = vadd.f32 0.0, %v192
  %v194 = vpop.f32.mrf.mxu0
  %195 = vmatprep.mubr.bf16.mxu0 0
  %196 = vmatmul.mubr.bf16.gmra.mxu0 %v125
  %v197 = vpop.f32.mrf.mxu0
  %v198 = vadd.f32 0.0, %v197
  %v199 = vpop.f32.mrf.mxu0
  %v200 = vpop.f32.mrf.mxu0
  %v201 = vadd.f32 0.0, %v200
  %v202 = vpop.f32.mrf.mxu0
  %203 = vmatprep.mubr.bf16.mxu0 0
  %204 = vmatmul.mubr.bf16.gmra.mxu0 %v128
  %v205 = vpop.f32.mrf.mxu0
  %v206 = vadd.f32 0.0, %v205
  %v207 = vpop.f32.mrf.mxu0
  %v208 = vpop.f32.mrf.mxu0
  %v209 = vadd.f32 0.0, %v208
  %v210 = vpop.f32.mrf.mxu0
  %211 = vmatprep.mubr.bf16.mxu0 0
  %212 = vmatmul.mubr.bf16.gmra.mxu0 %v131
  %v213 = vpop.f32.mrf.mxu0
  %v214 = vadd.f32 0.0, %v213
  %v215 = vpop.f32.mrf.mxu0
  %v216 = vpop.f32.mrf.mxu0
  %v217 = vadd.f32 0.0, %v216
  %v218 = vpop.f32.mrf.mxu0
  %219 = vmatprep.mubr.bf16.mxu0 0
  %220 = vmatmul.mubr.bf16.gmra.mxu0 %v134
  %v221 = vpop.f32.mrf.mxu0
  %v222 = vadd.f32 0.0, %v221
  %v223 = vpop.f32.mrf.mxu0
  %v224 = vpop.f32.mrf.mxu0
  %v225 = vadd.f32 0.0, %v224
  %v226 = vpop.f32.mrf.mxu0
  %227 = vmatprep.mubr.bf16.mxu0 0
  %228 = vmatmul.mubr.bf16.gmra.mxu0 %v137
  %v229 = vpop.f32.mrf.mxu0
  %v230 = vadd.f32 0.0, %v229
  %v231 = vpop.f32.mrf.mxu0
  %v232 = vpop.f32.mrf.mxu0
  %v233 = vadd.f32 0.0, %v232
  %v234 = vpop.f32.mrf.mxu0
  %235 = vdwg.mxu0
  %v236 = vadd.f32 %v92, %v174
  %v237 = vadd.f32 %v93, %v177
  %v238 = vadd.f32 %v94, %v182
  %v239 = vadd.f32 %v95, %v185
  %v240 = vadd.f32 %v96, %v190
  %v241 = vadd.f32 %v97, %v193
  %v242 = vadd.f32 %v98, %v198
  %v243 = vadd.f32 %v99, %v201
  %v244 = vadd.f32 %v100, %v206
  %v245 = vadd.f32 %v101, %v209
  %v246 = vadd.f32 %v102, %v214
  %v247 = vadd.f32 %v103, %v217
  %v248 = vadd.f32 %v104, %v222
  %v249 = vadd.f32 %v105, %v225
  %v250 = vadd.f32 %v106, %v230
  %v251 = vadd.f32 %v107, %v233
  %252 = vst.msk [vmem:[#allocation2] sm:$0xff] %vm114, %v236
  %253 = vst.msk [vmem:[#allocation2 + $0x8] sm:$0xff] %vm114, %v237
  %254 = vst.msk [vmem:[#allocation2 + $0x10] sm:$0xff] %vm114, %v238
  %255 = vst.msk [vmem:[#allocation2 + $0x18] sm:$0xff] %vm114, %v239
  %256 = vst.msk [vmem:[#allocation2 + $0x20] sm:$0xff] %vm114, %v240
  %257 = vst.msk [vmem:[#allocation2 + $0x28] sm:$0xff] %vm114, %v241
  %258 = vst.msk [vmem:[#allocation2 + $0x30] sm:$0xff] %vm114, %v242
  %259 = vst.msk [vmem:[#allocation2 + $0x38] sm:$0xff] %vm114, %v243
  %260 = vst.msk [vmem:[#allocation2 + $0x40] sm:$0xff] %vm114, %v244
  %261 = vst.msk [vmem:[#allocation2 + $0x48] sm:$0xff] %vm114, %v245
  %262 = vst.msk [vmem:[#allocation2 + $0x50] sm:$0xff] %vm114, %v246
  %263 = vst.msk [vmem:[#allocation2 + $0x58] sm:$0xff] %vm114, %v247
  %264 = vst.msk [vmem:[#allocation2 + $0x60] sm:$0xff] %vm114, %v248
  %265 = vst.msk [vmem:[#allocation2 + $0x68] sm:$0xff] %vm114, %v249
  %266 = vst.msk [vmem:[#allocation2 + $0x70] sm:$0xff] %vm114, %v250
  %267 = vst.msk [vmem:[#allocation2 + $0x78] sm:$0xff] %vm114, %v251
  %s268 = scalar_lea.vmem [#allocation2], 128
  %v269 = vld [vmem:[%s268] sm:$0xff]
  %v270 = vld [vmem:[%s268 + $0x8] sm:$0xff]
  %v271 = vld [vmem:[%s268 + $0x10] sm:$0xff]
  %v272 = vld [vmem:[%s268 + $0x18] sm:$0xff]
  %v273 = vld [vmem:[%s268 + $0x20] sm:$0xff]
  %v274 = vld [vmem:[%s268 + $0x28] sm:$0xff]
  %v275 = vld [vmem:[%s268 + $0x30] sm:$0xff]
  %v276 = vld [vmem:[%s268 + $0x38] sm:$0xff]
  %v277 = vld [vmem:[%s268 + $0x40] sm:$0xff]
  %v278 = vld [vmem:[%s268 + $0x48] sm:$0xff]
  %v279 = vld [vmem:[%s268 + $0x50] sm:$0xff]
  %v280 = vld [vmem:[%s268 + $0x58] sm:$0xff]
  %v281 = vld [vmem:[%s268 + $0x60] sm:$0xff]
  %v282 = vld [vmem:[%s268 + $0x68] sm:$0xff]
  %v283 = vld [vmem:[%s268 + $0x70] sm:$0xff]
  %v284 = vld [vmem:[%s268 + $0x78] sm:$0xff]
  %s285 = scalar_lea.vmem %s1, 32
  %v286 = vld [vmem:[%s285] sm:$0xff]
  %v287 = vld [vmem:[%s285 + $0x8] sm:$0xff]
  %v288 = vld [vmem:[%s285 + $0x10] sm:$0xff]
  %v289 = vld [vmem:[%s285 + $0x18] sm:$0xff]
  %v290 = vpack.c.bf16 %v287, %v286
  %v291 = vpack.c.bf16 %v289, %v288
  %292 = vmatprep.subr.bf16.mxu0 0
  %293 = vmatpush1.bf16.msra.mxu0 0
  %294 = vmatprep.subr.bf16.mxu0 0
  %295 = vmatpush1.bf16.msra.mxu0 0
  %296 = vmatprep.subr.bf16.mxu0 0
  %297 = vmatpush1.bf16.msra.mxu0 0
  %298 = vmatprep.subr.bf16.mxu0 0
  %299 = vmatpush1.bf16.msra.mxu0 0
  %300 = vmatprep.subr.bf16.mxu0 0
  %301 = vmatpush1.bf16.msra.mxu0 0
  %302 = vmatprep.subr.bf16.mxu0 0
  %303 = vmatpush1.bf16.msra.mxu0 0
  %304 = vmatprep.subr.bf16.mxu0 0
  %305 = vmatpush1.bf16.msra.mxu0 %v291
  %306 = vmatprep.subr.bf16.mxu0 0
  %307 = vmatpush1.bf16.msra.mxu0 %v290
  %308 = vmatprep.subr.bf16.mxu0 0
  %309 = vmatpush2.bf16.msra.mxu0 0
  %310 = vmatprep.subr.bf16.mxu0 0
  %311 = vmatpush2.bf16.msra.mxu0 0
  %312 = vmatprep.subr.bf16.mxu0 0
  %313 = vmatpush2.bf16.msra.mxu0 0
  %314 = vmatprep.subr.bf16.mxu0 0
  %315 = vmatpush2.bf16.msra.mxu0 0
  %316 = vmatprep.subr.bf16.mxu0 0
  %317 = vmatpush2.bf16.msra.mxu0 0
  %318 = vmatprep.subr.bf16.mxu0 0
  %319 = vmatpush2.bf16.msra.mxu0 0
  %320 = vmatprep.subr.bf16.mxu0 0
  %321 = vmatpush2.bf16.msra.mxu0 0
  %322 = vmatprep.subr.bf16.mxu0 0
  %323 = vmatpush2.bf16.msra.mxu0 0
  %324 = vmatprep.mubr.bf16.mxu0 0
  %325 = vmatmul.mubr.bf16.gmra.mxu0 %v116
  %v326 = vpop.f32.mrf.mxu0
  %v327 = vadd.f32 0.0, %v326
  %v328 = vpop.f32.mrf.mxu0
  %v329 = vpop.f32.mrf.mxu0
  %v330 = vadd.f32 0.0, %v329
  %v331 = vpop.f32.mrf.mxu0
  %332 = vmatprep.mubr.bf16.mxu0 0
  %333 = vmatmul.mubr.bf16.gmra.mxu0 %v119
  %v334 = vpop.f32.mrf.mxu0
  %v335 = vadd.f32 0.0, %v334
  %v336 = vpop.f32.mrf.mxu0
  %v337 = vpop.f32.mrf.mxu0
  %v338 = vadd.f32 0.0, %v337
  %v339 = vpop.f32.mrf.mxu0
  %340 = vmatprep.mubr.bf16.mxu0 0
  %341 = vmatmul.mubr.bf16.gmra.mxu0 %v122
  %v342 = vpop.f32.mrf.mxu0
  %v343 = vadd.f32 0.0, %v342
  %v344 = vpop.f32.mrf.mxu0
  %v345 = vpop.f32.mrf.mxu0
  %v346 = vadd.f32 0.0, %v345
  %v347 = vpop.f32.mrf.mxu0
  %348 = vmatprep.mubr.bf16.mxu0 0
  %349 = vmatmul.mubr.bf16.gmra.mxu0 %v125
  %v350 = vpop.f32.mrf.mxu0
  %v351 = vadd.f32 0.0, %v350
  %v352 = vpop.f32.mrf.mxu0
  %v353 = vpop.f32.mrf.mxu0
  %v354 = vadd.f32 0.0, %v353
  %v355 = vpop.f32.mrf.mxu0
  %356 = vmatprep.mubr.bf16.mxu0 0
  %357 = vmatmul.mubr.bf16.gmra.mxu0 %v128
  %v358 = vpop.f32.mrf.mxu0
  %v359 = vadd.f32 0.0, %v358
  %v360 = vpop.f32.mrf.mxu0
  %v361 = vpop.f32.mrf.mxu0
  %v362 = vadd.f32 0.0, %v361
  %v363 = vpop.f32.mrf.mxu0
  %364 = vmatprep.mubr.bf16.mxu0 0
  %365 = vmatmul.mubr.bf16.gmra.mxu0 %v131
  %v366 = vpop.f32.mrf.mxu0
  %v367 = vadd.f32 0.0, %v366
  %v368 = vpop.f32.mrf.mxu0
  %v369 = vpop.f32.mrf.mxu0
  %v370 = vadd.f32 0.0, %v369
  %v371 = vpop.f32.mrf.mxu0
  %372 = vmatprep.mubr.bf16.mxu0 0
  %373 = vmatmul.mubr.bf16.gmra.mxu0 %v134
  %v374 = vpop.f32.mrf.mxu0
  %v375 = vadd.f32 0.0, %v374
  %v376 = vpop.f32.mrf.mxu0
  %v377 = vpop.f32.mrf.mxu0
  %v378 = vadd.f32 0.0, %v377
  %v379 = vpop.f32.mrf.mxu0
  %380 = vmatprep.mubr.bf16.mxu0 0
  %381 = vmatmul.mubr.bf16.gmra.mxu0 %v137
  %v382 = vpop.f32.mrf.mxu0
  %v383 = vadd.f32 0.0, %v382
  %v384 = vpop.f32.mrf.mxu0
  %v385 = vpop.f32.mrf.mxu0
  %v386 = vadd.f32 0.0, %v385
  %v387 = vpop.f32.mrf.mxu0
  %388 = vdwg.mxu0
  %v389 = vadd.f32 %v269, %v327
  %v390 = vadd.f32 %v270, %v330
  %v391 = vadd.f32 %v271, %v335
  %v392 = vadd.f32 %v272, %v338
  %v393 = vadd.f32 %v273, %v343
  %v394 = vadd.f32 %v274, %v346
  %v395 = vadd.f32 %v275, %v351
  %v396 = vadd.f32 %v276, %v354
  %v397 = vadd.f32 %v277, %v359
  %v398 = vadd.f32 %v278, %v362
  %v399 = vadd.f32 %v279, %v367
  %v400 = vadd.f32 %v280, %v370
  %v401 = vadd.f32 %v281, %v375
  %v402 = vadd.f32 %v282, %v378
  %v403 = vadd.f32 %v283, %v383
  %v404 = vadd.f32 %v284, %v386
  %405 = vst.msk [vmem:[%s268] sm:$0xff] %vm114, %v389
  %406 = vst.msk [vmem:[%s268 + $0x8] sm:$0xff] %vm114, %v390
  %407 = vst.msk [vmem:[%s268 + $0x10] sm:$0xff] %vm114, %v391
  %408 = vst.msk [vmem:[%s268 + $0x18] sm:$0xff] %vm114, %v392
  %409 = vst.msk [vmem:[%s268 + $0x20] sm:$0xff] %vm114, %v393
  %410 = vst.msk [vmem:[%s268 + $0x28] sm:$0xff] %vm114, %v394
  %411 = vst.msk [vmem:[%s268 + $0x30] sm:$0xff] %vm114, %v395
  %412 = vst.msk [vmem:[%s268 + $0x38] sm:$0xff] %vm114, %v396
  %413 = vst.msk [vmem:[%s268 + $0x40] sm:$0xff] %vm114, %v397
  %414 = vst.msk [vmem:[%s268 + $0x48] sm:$0xff] %vm114, %v398
  %415 = vst.msk [vmem:[%s268 + $0x50] sm:$0xff] %vm114, %v399
  %416 = vst.msk [vmem:[%s268 + $0x58] sm:$0xff] %vm114, %v400
  %417 = vst.msk [vmem:[%s268 + $0x60] sm:$0xff] %vm114, %v401
  %418 = vst.msk [vmem:[%s268 + $0x68] sm:$0xff] %vm114, %v402
  %419 = vst.msk [vmem:[%s268 + $0x70] sm:$0xff] %vm114, %v403
  %420 = vst.msk [vmem:[%s268 + $0x78] sm:$0xff] %vm114, %v404
  %s421 = scalar_lea.vmem [#allocation2], 256
  %v422 = vld [vmem:[%s421] sm:$0xff]
  %v423 = vld [vmem:[%s421 + $0x8] sm:$0xff]
  %v424 = vld [vmem:[%s421 + $0x10] sm:$0xff]
  %v425 = vld [vmem:[%s421 + $0x18] sm:$0xff]
  %v426 = vld [vmem:[%s421 + $0x20] sm:$0xff]
  %v427 = vld [vmem:[%s421 + $0x28] sm:$0xff]
  %v428 = vld [vmem:[%s421 + $0x30] sm:$0xff]
  %v429 = vld [vmem:[%s421 + $0x38] sm:$0xff]
  %v430 = vld [vmem:[%s421 + $0x40] sm:$0xff]
  %v431 = vld [vmem:[%s421 + $0x48] sm:$0xff]
  %v432 = vld [vmem:[%s421 + $0x50] sm:$0xff]
  %v433 = vld [vmem:[%s421 + $0x58] sm:$0xff]
  %v434 = vld [vmem:[%s421 + $0x60] sm:$0xff]
  %v435 = vld [vmem:[%s421 + $0x68] sm:$0xff]
  %v436 = vld [vmem:[%s421 + $0x70] sm:$0xff]
  %v437 = vld [vmem:[%s421 + $0x78] sm:$0xff]
  %s438 = scalar_lea.vmem %s1, 64
  %v439 = vld [vmem:[%s438] sm:$0xff]
  %v440 = vld [vmem:[%s438 + $0x8] sm:$0xff]
  %v441 = vld [vmem:[%s438 + $0x10] sm:$0xff]
  %v442 = vld [vmem:[%s438 + $0x18] sm:$0xff]
  %v443 = vpack.c.bf16 %v440, %v439
  %v444 = vpack.c.bf16 %v442, %v441
  %445 = vmatprep.subr.bf16.mxu0 0
  %446 = vmatpush1.bf16.msra.mxu0 0
  %447 = vmatprep.subr.bf16.mxu0 0
  %448 = vmatpush1.bf16.msra.mxu0 0
  %449 = vmatprep.subr.bf16.mxu0 0
  %450 = vmatpush1.bf16.msra.mxu0 0
  %451 = vmatprep.subr.bf16.mxu0 0
  %452 = vmatpush1.bf16.msra.mxu0 0
  %453 = vmatprep.subr.bf16.mxu0 0
  %454 = vmatpush1.bf16.msra.mxu0 0
  %455 = vmatprep.subr.bf16.mxu0 0
  %456 = vmatpush1.bf16.msra.mxu0 0
  %457 = vmatprep.subr.bf16.mxu0 0
  %458 = vmatpush1.bf16.msra.mxu0 %v444
  %459 = vmatprep.subr.bf16.mxu0 0
  %460 = vmatpush1.bf16.msra.mxu0 %v443
  %461 = vmatprep.subr.bf16.mxu0 0
  %462 = vmatpush2.bf16.msra.mxu0 0
  %463 = vmatprep.subr.bf16.mxu0 0
  %464 = vmatpush2.bf16.msra.mxu0 0
  %465 = vmatprep.subr.bf16.mxu0 0
  %466 = vmatpush2.bf16.msra.mxu0 0
  %467 = vmatprep.subr.bf16.mxu0 0
  %468 = vmatpush2.bf16.msra.mxu0 0
  %469 = vmatprep.subr.bf16.mxu0 0
  %470 = vmatpush2.bf16.msra.mxu0 0
  %471 = vmatprep.subr.bf16.mxu0 0
  %472 = vmatpush2.bf16.msra.mxu0 0
  %473 = vmatprep.subr.bf16.mxu0 0
  %474 = vmatpush2.bf16.msra.mxu0 0
  %475 = vmatprep.subr.bf16.mxu0 0
  %476 = vmatpush2.bf16.msra.mxu0 0
  %477 = vmatprep.mubr.bf16.mxu0 0
  %478 = vmatmul.mubr.bf16.gmra.mxu0 %v116
  %v479 = vpop.f32.mrf.mxu0
  %v480 = vadd.f32 0.0, %v479
  %v481 = vpop.f32.mrf.mxu0
  %v482 = vpop.f32.mrf.mxu0
  %v483 = vadd.f32 0.0, %v482
  %v484 = vpop.f32.mrf.mxu0
  %485 = vmatprep.mubr.bf16.mxu0 0
  %486 = vmatmul.mubr.bf16.gmra.mxu0 %v119
  %v487 = vpop.f32.mrf.mxu0
  %v488 = vadd.f32 0.0, %v487
  %v489 = vpop.f32.mrf.mxu0
  %v490 = vpop.f32.mrf.mxu0
  %v491 = vadd.f32 0.0, %v490
  %v492 = vpop.f32.mrf.mxu0
  %493 = vmatprep.mubr.bf16.mxu0 0
  %494 = vmatmul.mubr.bf16.gmra.mxu0 %v122
  %v495 = vpop.f32.mrf.mxu0
  %v496 = vadd.f32 0.0, %v495
  %v497 = vpop.f32.mrf.mxu0
  %v498 = vpop.f32.mrf.mxu0
  %v499 = vadd.f32 0.0, %v498
  %v500 = vpop.f32.mrf.mxu0
  %501 = vmatprep.mubr.bf16.mxu0 0
  %502 = vmatmul.mubr.bf16.gmra.mxu0 %v125
  %v503 = vpop.f32.mrf.mxu0
  %v504 = vadd.f32 0.0, %v503
  %v505 = vpop.f32.mrf.mxu0
  %v506 = vpop.f32.mrf.mxu0
  %v507 = vadd.f32 0.0, %v506
  %v508 = vpop.f32.mrf.mxu0
  %509 = vmatprep.mubr.bf16.mxu0 0
  %510 = vmatmul.mubr.bf16.gmra.mxu0 %v128
  %v511 = vpop.f32.mrf.mxu0
  %v512 = vadd.f32 0.0, %v511
  %v513 = vpop.f32.mrf.mxu0
  %v514 = vpop.f32.mrf.mxu0
  %v515 = vadd.f32 0.0, %v514
  %v516 = vpop.f32.mrf.mxu0
  %517 = vmatprep.mubr.bf16.mxu0 0
  %518 = vmatmul.mubr.bf16.gmra.mxu0 %v131
  %v519 = vpop.f32.mrf.mxu0
  %v520 = vadd.f32 0.0, %v519
  %v521 = vpop.f32.mrf.mxu0
  %v522 = vpop.f32.mrf.mxu0
  %v523 = vadd.f32 0.0, %v522
  %v524 = vpop.f32.mrf.mxu0
  %525 = vmatprep.mubr.bf16.mxu0 0
  %526 = vmatmul.mubr.bf16.gmra.mxu0 %v134
  %v527 = vpop.f32.mrf.mxu0
  %v528 = vadd.f32 0.0, %v527
  %v529 = vpop.f32.mrf.mxu0
  %v530 = vpop.f32.mrf.mxu0
  %v531 = vadd.f32 0.0, %v530
  %v532 = vpop.f32.mrf.mxu0
  %533 = vmatprep.mubr.bf16.mxu0 0
  %534 = vmatmul.mubr.bf16.gmra.mxu0 %v137
  %v535 = vpop.f32.mrf.mxu0
  %v536 = vadd.f32 0.0, %v535
  %v537 = vpop.f32.mrf.mxu0
  %v538 = vpop.f32.mrf.mxu0
  %v539 = vadd.f32 0.0, %v538
  %v540 = vpop.f32.mrf.mxu0
  %541 = vdwg.mxu0
  %v542 = vadd.f32 %v422, %v480
  %v543 = vadd.f32 %v423, %v483
  %v544 = vadd.f32 %v424, %v488
  %v545 = vadd.f32 %v425, %v491
  %v546 = vadd.f32 %v426, %v496
  %v547 = vadd.f32 %v427, %v499
  %v548 = vadd.f32 %v428, %v504
  %v549 = vadd.f32 %v429, %v507
  %v550 = vadd.f32 %v430, %v512
  %v551 = vadd.f32 %v431, %v515
  %v552 = vadd.f32 %v432, %v520
  %v553 = vadd.f32 %v433, %v523
  %v554 = vadd.f32 %v434, %v528
  %v555 = vadd.f32 %v435, %v531
  %v556 = vadd.f32 %v436, %v536
  %v557 = vadd.f32 %v437, %v539
  %558 = vst.msk [vmem:[%s421] sm:$0xff] %vm114, %v542
  %559 = vst.msk [vmem:[%s421 + $0x8] sm:$0xff] %vm114, %v543
  %560 = vst.msk [vmem:[%s421 + $0x10] sm:$0xff] %vm114, %v544
  %561 = vst.msk [vmem:[%s421 + $0x18] sm:$0xff] %vm114, %v545
  %562 = vst.msk [vmem:[%s421 + $0x20] sm:$0xff] %vm114, %v546
  %563 = vst.msk [vmem:[%s421 + $0x28] sm:$0xff] %vm114, %v547
  %564 = vst.msk [vmem:[%s421 + $0x30] sm:$0xff] %vm114, %v548
  %565 = vst.msk [vmem:[%s421 + $0x38] sm:$0xff] %vm114, %v549
  %566 = vst.msk [vmem:[%s421 + $0x40] sm:$0xff] %vm114, %v550
  %567 = vst.msk [vmem:[%s421 + $0x48] sm:$0xff] %vm114, %v551
  %568 = vst.msk [vmem:[%s421 + $0x50] sm:$0xff] %vm114, %v552
  %569 = vst.msk [vmem:[%s421 + $0x58] sm:$0xff] %vm114, %v553
  %570 = vst.msk [vmem:[%s421 + $0x60] sm:$0xff] %vm114, %v554
  %571 = vst.msk [vmem:[%s421 + $0x68] sm:$0xff] %vm114, %v555
  %572 = vst.msk [vmem:[%s421 + $0x70] sm:$0xff] %vm114, %v556
  %573 = vst.msk [vmem:[%s421 + $0x78] sm:$0xff] %vm114, %v557
  // Predicated region
  $region18: #{tpu_custom_call.1} parent=0 // pred_check
    %p574 = pneg %p15
  $region19: #{tpu_custom_call.1} parent=0 // pred_check_branch
    %576 = sbr.rel (%p574) target = $region21
  $region20: #{tpu_custom_call.1} parent=0 // pred_region
    %v577 = vld [vmem:[#allocation2] sm:$0xff]
    %v578 = vld [vmem:[#allocation2 + $0x8] sm:$0xff]
    %v579 = vld [vmem:[#allocation2 + $0x10] sm:$0xff]
    %v580 = vld [vmem:[#allocation2 + $0x18] sm:$0xff]
    %v581 = vld [vmem:[#allocation2 + $0x20] sm:$0xff]
    %v582 = vld [vmem:[#allocation2 + $0x28] sm:$0xff]
    %v583 = vld [vmem:[#allocation2 + $0x30] sm:$0xff]
    %v584 = vld [vmem:[#allocation2 + $0x38] sm:$0xff]
    %v585 = vld [vmem:[#allocation2 + $0x40] sm:$0xff]
    %v586 = vld [vmem:[#allocation2 + $0x48] sm:$0xff]
    %v587 = vld [vmem:[#allocation2 + $0x50] sm:$0xff]
    %v588 = vld [vmem:[#allocation2 + $0x58] sm:$0xff]
    %v589 = vld [vmem:[#allocation2 + $0x60] sm:$0xff]
    %v590 = vld [vmem:[#allocation2 + $0x68] sm:$0xff]
    %v591 = vld [vmem:[#allocation2 + $0x70] sm:$0xff]
    %v592 = vld [vmem:[#allocation2 + $0x78] sm:$0xff]
    %v593 = vld [vmem:[#allocation2 + $0x80] sm:$0xff]
    %v594 = vld [vmem:[#allocation2 + $0x88] sm:$0xff]
    %v595 = vld [vmem:[#allocation2 + $0x90] sm:$0xff]
    %v596 = vld [vmem:[#allocation2 + $0x98] sm:$0xff]
    %v597 = vld [vmem:[#allocation2 + $0xa0] sm:$0xff]
    %v598 = vld [vmem:[#allocation2 + $0xa8] sm:$0xff]
    %v599 = vld [vmem:[#allocation2 + $0xb0] sm:$0xff]
    %v600 = vld [vmem:[#allocation2 + $0xb8] sm:$0xff]
    %v601 = vld [vmem:[#allocation2 + $0xc0] sm:$0xff]
    %v602 = vld [vmem:[#allocation2 + $0xc8] sm:$0xff]
    %v603 = vld [vmem:[#allocation2 + $0xd0] sm:$0xff]
    %v604 = vld [vmem:[#allocation2 + $0xd8] sm:$0xff]
    %v605 = vld [vmem:[#allocation2 + $0xe0] sm:$0xff]
    %v606 = vld [vmem:[#allocation2 + $0xe8] sm:$0xff]
    %v607 = vld [vmem:[#allocation2 + $0xf0] sm:$0xff]
    %v608 = vld [vmem:[#allocation2 + $0xf8] sm:$0xff]
    %v609 = vld [vmem:[#allocation2 + $0x100] sm:$0xff]
    %v610 = vld [vmem:[#allocation2 + $0x108] sm:$0xff]
    %v611 = vld [vmem:[#allocation2 + $0x110] sm:$0xff]
    %v612 = vld [vmem:[#allocation2 + $0x118] sm:$0xff]
    %v613 = vld [vmem:[#allocation2 + $0x120] sm:$0xff]
    %v614 = vld [vmem:[#allocation2 + $0x128] sm:$0xff]
    %v615 = vld [vmem:[#allocation2 + $0x130] sm:$0xff]
    %v616 = vld [vmem:[#allocation2 + $0x138] sm:$0xff]
    %v617 = vld [vmem:[#allocation2 + $0x140] sm:$0xff]
    %v618 = vld [vmem:[#allocation2 + $0x148] sm:$0xff]
    %v619 = vld [vmem:[#allocation2 + $0x150] sm:$0xff]
    %v620 = vld [vmem:[#allocation2 + $0x158] sm:$0xff]
    %v621 = vld [vmem:[#allocation2 + $0x160] sm:$0xff]
    %v622 = vld [vmem:[#allocation2 + $0x168] sm:$0xff]
    %v623 = vld [vmem:[#allocation2 + $0x170] sm:$0xff]
    %v624 = vld [vmem:[#allocation2 + $0x178] sm:$0xff]
    %v625 = vld [vmem:[%s2] sm:$0x1]
    %v626 = vld [vmem:[%s2 + $0x1] sm:$0x1]
    %v627 = vld [vmem:[%s2 + $0x2] sm:$0x1]
    %v631 = vlaneseq
    %v632 = vshrl.u32 %v631, 7
    %v633 = vsub.s32 0, %v632
    %v634 = vrot.slane %v625, %v633
    %v635 = vlaneseq
    %v636 = vshrl.u32 %v635, 7
    %v637 = vsub.s32 0, %v636
    %v638 = vrot.slane %v626, %v637
    %v639 = vlaneseq
    %v640 = vshrl.u32 %v639, 7
    %v641 = vsub.s32 0, %v640
    %v642 = vrot.slane %v627, %v641
    %v646 = vadd.f32 %v577, %v634
    %v647 = vadd.f32 %v578, %v634
    %v648 = vadd.f32 %v579, %v634
    %v649 = vadd.f32 %v580, %v634
    %v650 = vadd.f32 %v581, %v634
    %v651 = vadd.f32 %v582, %v634
    %v652 = vadd.f32 %v583, %v634
    %v653 = vadd.f32 %v584, %v634
    %v654 = vadd.f32 %v585, %v634
    %v655 = vadd.f32 %v586, %v634
    %v656 = vadd.f32 %v587, %v634
    %v657 = vadd.f32 %v588, %v634
    %v658 = vadd.f32 %v589, %v634
    %v659 = vadd.f32 %v590, %v634
    %v660 = vadd.f32 %v591, %v634
    %v661 = vadd.f32 %v592, %v634
    %v662 = vadd.f32 %v593, %v638
    %v663 = vadd.f32 %v594, %v638
    %v664 = vadd.f32 %v595, %v638
    %v665 = vadd.f32 %v596, %v638
    %v666 = vadd.f32 %v597, %v638
    %v667 = vadd.f32 %v598, %v638
    %v668 = vadd.f32 %v599, %v638
    %v669 = vadd.f32 %v600, %v638
    %v670 = vadd.f32 %v601, %v638
    %v671 = vadd.f32 %v602, %v638
    %v672 = vadd.f32 %v603, %v638
    %v673 = vadd.f32 %v604, %v638
    %v674 = vadd.f32 %v605, %v638
    %v675 = vadd.f32 %v606, %v638
    %v676 = vadd.f32 %v607, %v638
    %v677 = vadd.f32 %v608, %v638
    %v678 = vadd.f32 %v609, %v642
    %v679 = vadd.f32 %v610, %v642
    %v680 = vadd.f32 %v611, %v642
    %v681 = vadd.f32 %v612, %v642
    %v682 = vadd.f32 %v613, %v642
    %v683 = vadd.f32 %v614, %v642
    %v684 = vadd.f32 %v615, %v642
    %v685 = vadd.f32 %v616, %v642
    %v686 = vadd.f32 %v617, %v642
    %v687 = vadd.f32 %v618, %v642
    %v688 = vadd.f32 %v619, %v642
    %v689 = vadd.f32 %v620, %v642
    %v690 = vadd.f32 %v621, %v642
    %v691 = vadd.f32 %v622, %v642
    %v692 = vadd.f32 %v623, %v642
    %v693 = vadd.f32 %v624, %v642
    %v694 = vpack.c.bf16 %v647, %v646
    %v695 = vpack.c.bf16 %v649, %v648
    %v696 = vpack.c.bf16 %v651, %v650
    %v697 = vpack.c.bf16 %v653, %v652
    %v698 = vpack.c.bf16 %v655, %v654
    %v699 = vpack.c.bf16 %v657, %v656
    %v700 = vpack.c.bf16 %v659, %v658
    %v701 = vpack.c.bf16 %v661, %v660
    %v702 = vpack.c.bf16 %v663, %v662
    %v703 = vpack.c.bf16 %v665, %v664
    %v704 = vpack.c.bf16 %v667, %v666
    %v705 = vpack.c.bf16 %v669, %v668
    %v706 = vpack.c.bf16 %v671, %v670
    %v707 = vpack.c.bf16 %v673, %v672
    %v708 = vpack.c.bf16 %v675, %v674
    %v709 = vpack.c.bf16 %v677, %v676
    %v710 = vpack.c.bf16 %v679, %v678
    %v711 = vpack.c.bf16 %v681, %v680
    %v712 = vpack.c.bf16 %v683, %v682
    %v713 = vpack.c.bf16 %v685, %v684
    %v714 = vpack.c.bf16 %v687, %v686
    %v715 = vpack.c.bf16 %v689, %v688
    %v716 = vpack.c.bf16 %v691, %v690
    %v717 = vpack.c.bf16 %v693, %v692
    %v742 = vunpack.c.l.b16 %v694
    %v743 = vunpack.c.h.b16 %v694
    %v744 = vunpack.c.l.b16 %v695
    %v745 = vunpack.c.h.b16 %v695
    %v746 = vunpack.c.l.b16 %v696
    %v747 = vunpack.c.h.b16 %v696
    %v748 = vunpack.c.l.b16 %v697
    %v749 = vunpack.c.h.b16 %v697
    %v750 = vunpack.c.l.b16 %v698
    %v751 = vunpack.c.h.b16 %v698
    %v752 = vunpack.c.l.b16 %v699
    %v753 = vunpack.c.h.b16 %v699
    %v754 = vunpack.c.l.b16 %v700
    %v755 = vunpack.c.h.b16 %v700
    %v756 = vunpack.c.l.b16 %v701
    %v757 = vunpack.c.h.b16 %v701
    %v758 = vunpack.c.l.b16 %v702
    %v759 = vunpack.c.h.b16 %v702
    %v760 = vunpack.c.l.b16 %v703
    %v761 = vunpack.c.h.b16 %v703
    %v762 = vunpack.c.l.b16 %v704
    %v763 = vunpack.c.h.b16 %v704
    %v764 = vunpack.c.l.b16 %v705
    %v765 = vunpack.c.h.b16 %v705
    %v766 = vunpack.c.l.b16 %v706
    %v767 = vunpack.c.h.b16 %v706
    %v768 = vunpack.c.l.b16 %v707
    %v769 = vunpack.c.h.b16 %v707
    %v770 = vunpack.c.l.b16 %v708
    %v771 = vunpack.c.h.b16 %v708
    %v772 = vunpack.c.l.b16 %v709
    %v773 = vunpack.c.h.b16 %v709
    %v774 = vunpack.c.l.b16 %v710
    %v775 = vunpack.c.h.b16 %v710
    %v776 = vunpack.c.l.b16 %v711
    %v777 = vunpack.c.h.b16 %v711
    %v778 = vunpack.c.l.b16 %v712
    %v779 = vunpack.c.h.b16 %v712
    %v780 = vunpack.c.l.b16 %v713
    %v781 = vunpack.c.h.b16 %v713
    %v782 = vunpack.c.l.b16 %v714
    %v783 = vunpack.c.h.b16 %v714
    %v784 = vunpack.c.l.b16 %v715
    %v785 = vunpack.c.h.b16 %v715
    %v786 = vunpack.c.l.b16 %v716
    %v787 = vunpack.c.h.b16 %v716
    %v788 = vunpack.c.l.b16 %v717
    %v789 = vunpack.c.h.b16 %v717
    %v790 = vpack.c.b16 %v742, %v742
    %v791 = vpack.c.b16 %v743, %v743
    %v792 = vpack.c.b16 %v744, %v744
    %v793 = vpack.c.b16 %v745, %v745
    %v794 = vpack.c.b16 %v746, %v746
    %v795 = vpack.c.b16 %v747, %v747
    %v796 = vpack.c.b16 %v748, %v748
    %v797 = vpack.c.b16 %v749, %v749
    %v798 = vpack.c.b16 %v750, %v750
    %v799 = vpack.c.b16 %v751, %v751
    %v800 = vpack.c.b16 %v752, %v752
    %v801 = vpack.c.b16 %v753, %v753
    %v802 = vpack.c.b16 %v754, %v754
    %v803 = vpack.c.b16 %v755, %v755
    %v804 = vpack.c.b16 %v756, %v756
    %v805 = vpack.c.b16 %v757, %v757
    %v806 = vpack.c.b16 %v758, %v758
    %v807 = vpack.c.b16 %v759, %v759
    %v808 = vpack.c.b16 %v760, %v760
    %v809 = vpack.c.b16 %v761, %v761
    %v810 = vpack.c.b16 %v762, %v762
    %v811 = vpack.c.b16 %v763, %v763
    %v812 = vpack.c.b16 %v764, %v764
    %v813 = vpack.c.b16 %v765, %v765
    %v814 = vpack.c.b16 %v766, %v766
    %v815 = vpack.c.b16 %v767, %v767
    %v816 = vpack.c.b16 %v768, %v768
    %v817 = vpack.c.b16 %v769, %v769
    %v818 = vpack.c.b16 %v770, %v770
    %v819 = vpack.c.b16 %v771, %v771
    %v820 = vpack.c.b16 %v772, %v772
    %v821 = vpack.c.b16 %v773, %v773
    %v822 = vpack.c.b16 %v774, %v774
    %v823 = vpack.c.b16 %v775, %v775
    %v824 = vpack.c.b16 %v776, %v776
    %v825 = vpack.c.b16 %v777, %v777
    %v826 = vpack.c.b16 %v778, %v778
    %v827 = vpack.c.b16 %v779, %v779
    %v828 = vpack.c.b16 %v780, %v780
    %v829 = vpack.c.b16 %v781, %v781
    %v830 = vpack.c.b16 %v782, %v782
    %v831 = vpack.c.b16 %v783, %v783
    %v832 = vpack.c.b16 %v784, %v784
    %v833 = vpack.c.b16 %v785, %v785
    %v834 = vpack.c.b16 %v786, %v786
    %v835 = vpack.c.b16 %v787, %v787
    %v836 = vpack.c.b16 %v788, %v788
    %v837 = vpack.c.b16 %v789, %v789
    %vm886 = vcmask 257024
    %887 = vst.msk [vmem:[%s3] sm:$0xf] %vm886, %v790
    %888 = vst.msk [vmem:[%s3 + $0x4] sm:$0xf] %vm886, %v791
    %889 = vst.msk [vmem:[%s3 + $0x8] sm:$0xf] %vm886, %v792
    %890 = vst.msk [vmem:[%s3 + $0xc] sm:$0xf] %vm886, %v793
    %891 = vst.msk [vmem:[%s3 + $0x10] sm:$0xf] %vm886, %v794
    %892 = vst.msk [vmem:[%s3 + $0x14] sm:$0xf] %vm886, %v795
    %893 = vst.msk [vmem:[%s3 + $0x18] sm:$0xf] %vm886, %v796
    %894 = vst.msk [vmem:[%s3 + $0x1c] sm:$0xf] %vm886, %v797
    %895 = vst.msk [vmem:[%s3 + $0x20] sm:$0xf] %vm886, %v798
    %896 = vst.msk [vmem:[%s3 + $0x24] sm:$0xf] %vm886, %v799
    %897 = vst.msk [vmem:[%s3 + $0x28] sm:$0xf] %vm886, %v800
    %898 = vst.msk [vmem:[%s3 + $0x2c] sm:$0xf] %vm886, %v801
    %899 = vst.msk [vmem:[%s3 + $0x30] sm:$0xf] %vm886, %v802
    %900 = vst.msk [vmem:[%s3 + $0x34] sm:$0xf] %vm886, %v803
    %901 = vst.msk [vmem:[%s3 + $0x38] sm:$0xf] %vm886, %v804
    %902 = vst.msk [vmem:[%s3 + $0x3c] sm:$0xf] %vm886, %v805
    %903 = vst.msk [vmem:[%s3 + $0x40] sm:$0xf] %vm886, %v806
    %904 = vst.msk [vmem:[%s3 + $0x44] sm:$0xf] %vm886, %v807
    %905 = vst.msk [vmem:[%s3 + $0x48] sm:$0xf] %vm886, %v808
    %906 = vst.msk [vmem:[%s3 + $0x4c] sm:$0xf] %vm886, %v809
    %907 = vst.msk [vmem:[%s3 + $0x50] sm:$0xf] %vm886, %v810
    %908 = vst.msk [vmem:[%s3 + $0x54] sm:$0xf] %vm886, %v811
    %909 = vst.msk [vmem:[%s3 + $0x58] sm:$0xf] %vm886, %v812
    %910 = vst.msk [vmem:[%s3 + $0x5c] sm:$0xf] %vm886, %v813
    %911 = vst.msk [vmem:[%s3 + $0x60] sm:$0xf] %vm886, %v814
    %912 = vst.msk [vmem:[%s3 + $0x64] sm:$0xf] %vm886, %v815
    %913 = vst.msk [vmem:[%s3 + $0x68] sm:$0xf] %vm886, %v816
    %914 = vst.msk [vmem:[%s3 + $0x6c] sm:$0xf] %vm886, %v817
    %915 = vst.msk [vmem:[%s3 + $0x70] sm:$0xf] %vm886, %v818
    %916 = vst.msk [vmem:[%s3 + $0x74] sm:$0xf] %vm886, %v819
    %917 = vst.msk [vmem:[%s3 + $0x78] sm:$0xf] %vm886, %v820
    %918 = vst.msk [vmem:[%s3 + $0x7c] sm:$0xf] %vm886, %v821
    %919 = vst.msk [vmem:[%s3 + $0x80] sm:$0xf] %vm886, %v822
    %920 = vst.msk [vmem:[%s3 + $0x84] sm:$0xf] %vm886, %v823
    %921 = vst.msk [vmem:[%s3 + $0x88] sm:$0xf] %vm886, %v824
    %922 = vst.msk [vmem:[%s3 + $0x8c] sm:$0xf] %vm886, %v825
    %923 = vst.msk [vmem:[%s3 + $0x90] sm:$0xf] %vm886, %v826
    %924 = vst.msk [vmem:[%s3 + $0x94] sm:$0xf] %vm886, %v827
    %925 = vst.msk [vmem:[%s3 + $0x98] sm:$0xf] %vm886, %v828
    %926 = vst.msk [vmem:[%s3 + $0x9c] sm:$0xf] %vm886, %v829
    %927 = vst.msk [vmem:[%s3 + $0xa0] sm:$0xf] %vm886, %v830
    %928 = vst.msk [vmem:[%s3 + $0xa4] sm:$0xf] %vm886, %v831
    %929 = vst.msk [vmem:[%s3 + $0xa8] sm:$0xf] %vm886, %v832
    %930 = vst.msk [vmem:[%s3 + $0xac] sm:$0xf] %vm886, %v833
    %931 = vst.msk [vmem:[%s3 + $0xb0] sm:$0xf] %vm886, %v834
    %932 = vst.msk [vmem:[%s3 + $0xb4] sm:$0xf] %vm886, %v835
    %933 = vst.msk [vmem:[%s3 + $0xb8] sm:$0xf] %vm886, %v836
    %934 = vst.msk [vmem:[%s3 + $0xbc] sm:$0xf] %vm886, %v837
  $region21: #{tpu_custom_call.1} parent=0 // pred_fallthru
    _
  // Predicated region
  $region22: #{tpu_custom_call.1} parent=0 // pred_check
    _
  $region23: #{tpu_custom_call.1} parent=0 // pred_check_branch
    %936 = sbr.rel (0) target = $region25
  $region24: #{tpu_custom_call.1} parent=0 // pred_region
    _
  $region25: #{tpu_custom_call.1} parent=0 // pred_fallthru
    _
  // Predicated region
  $region26: #{tpu_custom_call.1} parent=0 // pred_check
    _
  $region27: #{tpu_custom_call.1} parent=0 // pred_check_branch
    %938 = sbr.rel (0) target = $region29
  $region28: #{tpu_custom_call.1} parent=0 // pred_region
    _
  $region29: #{tpu_custom_call.1} parent=0 // pred_fallthru
    _

</llo_original>
